<compile_context>
chip_gen: v7x
topology: tpu7x:2x2x1
jax: 0.10.0
libtpu: 0.0.40
codegen_flags: <defaults>
</compile_context>

<pallas_src>
import jax
import jax.numpy as jnp
from jax.experimental import pallas as pl
from jax.experimental.pallas import tpu as pltpu  # noqa: F401  (TPU backend)


def _fullnn_kernel(f_ref, w_ref, out_ref):
    # f_ref: (2, 512) stacked [fft; mtf] features, lane-dense.
    # w_ref: (2, 512) pre-folded (fc @ conv2 @ conv1) weight, lane-dense.
    # out_ref: (2, 1) biasless logits.
    combined = f_ref[0:1, :] + f_ref[1:2, :]          # VPU add      -> (1, 512)
    prod = combined * w_ref[...]                      # VPU bcast mul -> (2, 512)
    out_ref[...] = jnp.sum(prod, axis=-1, keepdims=True)  # XLU lane reduce -> (2, 1)


def prepare_fullnn_params(conv1_w, conv2_w, fc_w, fc_b):
    """One-time (off the hot path) exact weight folding.

    conv1 (512->256) -> maxpool(1x1)=id -> conv2 (256->128) -> maxpool(1x1)=id
    -> flatten -> Linear(128, 2).  No nonlinearities in between, so:
        out = x @ w1.T @ w2.T @ fc_w.T + b  ==  x @ (fc_w @ w2 @ w1).T + b
    Returns the folded weight in lane-dense (2, 512) layout and the (2,) bias.
    """
    w1 = conv1_w.reshape(256, 512).astype(jnp.float32)    # (C_out, C_in)
    w2 = conv2_w.reshape(128, 256).astype(jnp.float32)
    wf = fc_w.astype(jnp.float32)                          # (2, 128)
    w_folded_t = wf @ w2 @ w1                              # (2, 512), lane-dense
    b = fc_b.reshape(2).astype(jnp.float32)
    return w_folded_t, b


def fullnn_forward(feat_fft, feat_mtf, w_folded_t, fc_b):
    """feat_*: (1, 512) lane-dense backbone features (f32).
    w_folded_t: (2, 512) pre-folded weight chain, fc_b: (2,) bias.
    Returns (2,) float32 logits."""
    feats = jnp.concatenate([feat_fft, feat_mtf], axis=0)  # (2, 512)

    full = lambda shape: pl.BlockSpec(shape, lambda: (0,) * len(shape))

    out = pl.pallas_call(
        _fullnn_kernel,
        out_shape=jax.ShapeDtypeStruct((2, 1), jnp.float32),
        in_specs=[
            full((2, 512)),   # stacked [fft; mtf] features
            full((2, 512)),   # folded (fc @ conv2 @ conv1) weight, transposed
        ],
        out_specs=full((2, 1)),
    )(feats, w_folded_t)

    # Bias added in XLA (2 FLOPs) to avoid a padded bias tile / extra DMA.
    return out.reshape(2) + fc_b


def _reference(feat_fft_nchw, feat_mtf_nchw, conv1_w, conv2_w, fc_w, fc_b):
    # Mirrors the PyTorch graph op-by-op (no folding).
    f1 = feat_fft_nchw.reshape(1, 512)
    f2 = feat_mtf_nchw.reshape(1, 512)
    w1 = conv1_w.reshape(256, 512)
    w2 = conv2_w.reshape(128, 256)
    x_ftt = f1 @ w1.T
    x_mtf = f2 @ w1.T            # self.ftt used for both inputs in forward()
    combine = x_ftt + x_mtf
    hidden = combine @ w2.T
    return (hidden @ fc_w.T + fc_b.reshape(1, 2)).reshape(2)


if __name__ == "__main__":
    key = jax.random.PRNGKey(0)
    k_f1, k_f2, k_w1, k_w2, k_wfc, k_bfc = jax.random.split(key, 6)

    # Backbone output features (post layer4), NCHW with N=1, H=W=1.
    feat_fft_nchw = jax.random.normal(k_f1, (1, 512, 1, 1), dtype=jnp.float32)
    feat_mtf_nchw = jax.random.normal(k_f2, (1, 512, 1, 1), dtype=jnp.float32)

    # Deterministic synthetic parameters (shapes from the module __init__).
    conv1_w = jax.random.normal(k_w1, (256, 512, 1, 1), dtype=jnp.float32) * 0.02
    conv2_w = jax.random.normal(k_w2, (128, 256, 1, 1), dtype=jnp.float32) * 0.02
    fc_w = jax.random.normal(k_wfc, (2, 128), dtype=jnp.float32) * 0.05
    fc_b = jax.random.normal(k_bfc, (2,), dtype=jnp.float32) * 0.05

    # One-time weight folding (off the per-call hot path).
    w_folded_t, fc_b2 = prepare_fullnn_params(conv1_w, conv2_w, fc_w, fc_b)
    w_folded_t = jax.block_until_ready(w_folded_t)

    # Lane-dense activations, produced once off the hot path (the real
    # backbone should emit (1, 512) directly instead of NCHW (1, 512, 1, 1)).
    feat_fft = jax.block_until_ready(feat_fft_nchw.reshape(1, 512))
    feat_mtf = jax.block_until_ready(feat_mtf_nchw.reshape(1, 512))

    out = fullnn_forward(feat_fft, feat_mtf, w_folded_t, fc_b2)
    out = jax.block_until_ready(out)

    ref = _reference(feat_fft_nchw, feat_mtf_nchw, conv1_w, conv2_w, fc_w, fc_b)
    assert out.shape == (2,)
    assert jnp.allclose(out, ref, rtol=1e-4, atol=1e-4), (out, ref)

    print("KERNEL_OK")
</pallas_src>

<mosaic_0001>
module attributes {stable_mosaic.version = 11 : i64} {
  func.func @_fullnn_kernel(%arg0: memref<2x512xf32, #tpu.memory_space<vmem>>, %arg1: memref<2x512xf32, #tpu.memory_space<vmem>>, %arg2: memref<2x1xf32, #tpu.memory_space<vmem>>) attributes {dimension_semantics = [], scalar_prefetch = 0 : i64, scratch_operands = 0 : i64, tpu.core_type = #tpu.core_type<tc>} {
    %c0 = arith.constant 0 : index
    %c0_0 = arith.constant 0 : index
    %0 = vector.load %arg0[%c0, %c0_0] : memref<2x512xf32, #tpu.memory_space<vmem>>, vector<1x512xf32>
    %c1 = arith.constant 1 : index
    %c0_1 = arith.constant 0 : index
    %1 = vector.load %arg0[%c1, %c0_1] : memref<2x512xf32, #tpu.memory_space<vmem>>, vector<1x512xf32>
    %2 = arith.addf %0, %1 : vector<1x512xf32>
    %c0_2 = arith.constant 0 : index
    %c0_3 = arith.constant 0 : index
    %3 = vector.load %arg1[%c0_2, %c0_3] : memref<2x512xf32, #tpu.memory_space<vmem>>, vector<2x512xf32>
    %4 = vector.broadcast %2 : vector<1x512xf32> to vector<2x512xf32>
    %5 = arith.mulf %4, %3 : vector<2x512xf32>
    %cst = arith.constant dense<0.000000e+00> : vector<2xf32>
    %6 = vector.multi_reduction <add>, %5, %cst [1] : vector<2x512xf32> to vector<2xf32>
    %7 = vector.shape_cast %6 : vector<2xf32> to vector<2x1xf32>
    %c0_4 = arith.constant 0 : index
    %c0_5 = arith.constant 0 : index
    %8 = vector.load %arg2[%c0_4, %c0_5] : memref<2x1xf32, #tpu.memory_space<vmem>>, vector<2x1xf32>
    tpu.vector_store %arg2[%c0_4, %c0_5], %7 {strides = array<i32>} : memref<2x1xf32, #tpu.memory_space<vmem>>, vector<2x1xf32>,
    return
  }
}

</mosaic_0001>

<llo_original>
// kernel: tpu_custom_call.1
$region0: #{tpu_custom_call.1}
  #allocation0 [shape = 'u32[]', space=smem, size = 0x4, offset = 0x4, fixed_abs, tag = 'smem constant byte address 0x4 - core index']
  #allocation1 [shape = 'u32[144,128]{1,0:T(1,128)}', space=vmem, size = 0x12000, scoped, tag = 'internal scratch']
  %s0 = inlined_call_operand.hbm [shape: f32[2,512], index: 0, kind: input, shape index: {}]
  %s1 = inlined_call_operand.hbm [shape: f32[2,512], index: 1, kind: input, shape index: {}]
  %s2 = inlined_call_operand.vmem [shape: f32[2,1], index: 2, kind: output, shape index: {}]
  %s3 = sld [smem:[#allocation0]]
  $region26: #{tpu_custom_call.1} parent=0
    _
  %s5 = ssub.s32 1, %s3
  %s6 = scalar_select 0, %s5, %s3
  $region1: #{tpu_custom_call.1} parent=0
    #allocation2 [shape = 'u8[4096]{0}', space=vmem, size = 0x1000, scoped, tag = 'input window, operand 0, single buffered']
    #allocation3 [shape = 's32[1]{0}', space=sflag, size = 0x4, scoped, tag = 'scoped memory for tpu_custom_call.1']
    #allocation4 [shape = 'u8[4096]{0}', space=vmem, size = 0x1000, scoped, tag = 'input window, operand 1, single buffered']
    #allocation5 [shape = 's32[1]{0}', space=sflag, size = 0x4, scoped, tag = 'scoped memory for tpu_custom_call.1']
    %7 = vsyncpa [#allocation3], 0
    %8 = vsyncpa [#allocation5], 0
    // Predicated region
    $region2: #{tpu_custom_call.1} parent=1 // pred_check
      _
    $region3: #{tpu_custom_call.1} parent=1 // pred_check_branch
      %10 = sbr.rel (0) target = $region5
    $region4: #{tpu_custom_call.1} parent=1 // pred_region
      %s12 = ssub.s32 128, 128
      %13 = vsyncadd [#allocation3], %s12
      %s15 = sshll.u32 [#allocation2], 4
      %s16 = int_to_ptr.vmem [resolvable:$true] %s15
      %18 = dma.hbm_to_vmem [thread:$0]  %s0, 128, %s16, [#allocation3]
    $region5: #{tpu_custom_call.1} parent=1 // pred_fallthru
      _
    // Predicated region
    $region6: #{tpu_custom_call.1} parent=1 // pred_check
      _
    $region7: #{tpu_custom_call.1} parent=1 // pred_check_branch
      %20 = sbr.rel (0) target = $region9
    $region8: #{tpu_custom_call.1} parent=1 // pred_region
      %s22 = ssub.s32 128, 128
      %23 = vsyncadd [#allocation5], %s22
      %s25 = sshll.u32 [#allocation4], 4
      %s26 = int_to_ptr.vmem [resolvable:$true] %s25
      %28 = dma.hbm_to_vmem [thread:$0]  %s1, 128, %s26, [#allocation5]
    $region9: #{tpu_custom_call.1} parent=1 // pred_fallthru
      _
    // Predicated region
    $region10: #{tpu_custom_call.1} parent=1 // pred_check
      _
    $region11: #{tpu_custom_call.1} parent=1 // pred_check_branch
      %30 = sbr.rel (0) target = $region13
    $region12: #{tpu_custom_call.1} parent=1 // pred_region
      %31 = dma.done [#allocation3], 128
    $region13: #{tpu_custom_call.1} parent=1 // pred_fallthru
      _
    // Predicated region
    $region14: #{tpu_custom_call.1} parent=1 // pred_check
      _
    $region15: #{tpu_custom_call.1} parent=1 // pred_check_branch
      %33 = sbr.rel (0) target = $region17
    $region16: #{tpu_custom_call.1} parent=1 // pred_region
      %34 = dma.done [#allocation5], 128
    $region17: #{tpu_custom_call.1} parent=1 // pred_fallthru
      _
    %v35 = vld [vmem:[#allocation2] ss:$2 sm:$0xf]
    %s36 = scalar_lea.vmem [#allocation2], 1
    %v37 = vld [vmem:[%s36] ss:$2 sm:$0xf]
    %v38 = vadd.f32 %v35, %v37
    %v39 = vld [vmem:[#allocation4] sm:$0xff]
    %v41 = vlaneseq
    %v42 = vshrl.u32 %v41, 7
    %v43 = vsub.s32 0, %v42
    %v44 = vrot.slane %v38, %v43
    %v45 = vlaneseq
    %v46 = vshrl.u32 %v45, 7
    %v47 = vsub.s32 1, %v46
    %v48 = vrot.slane %v38, %v47
    %v49 = vlaneseq
    %v50 = vshrl.u32 %v49, 7
    %v51 = vsub.s32 2, %v50
    %v52 = vrot.slane %v38, %v51
    %v53 = vlaneseq
    %v54 = vshrl.u32 %v53, 7
    %v55 = vsub.s32 3, %v54
    %v56 = vrot.slane %v38, %v55
    %v62 = vcombine.high %v39, %v39
    %v64 = vunpack.c.l.s4 1983009808
    %v65 = vunpack.c.0.s8 %v64
    %v66 = vlaneseq
    %v67 = vshrl.u32 %v66, 7
    %v68 = vsub.s32 %v65, %v67
    %v69 = vrot.slane %v39, %v68
    %v71 = vunpack.c.l.s4 1983009808
    %v72 = vunpack.c.0.s8 %v71
    %v73 = vlaneseq
    %v74 = vshrl.u32 %v73, 7
    %v75 = vsub.s32 %v72, %v74
    %v76 = vrot.slane %v62, %v75
    %v77 = vcombine.high %v69, %v69
    %v78 = vcombine.high %v76, %v76
    %v83 = vmul.f32 %v44, %v69
    %v84 = vmul.f32 %v48, %v77
    %v85 = vmul.f32 %v52, %v76
    %v86 = vmul.f32 %v56, %v78
    %vm87 = vcmask 1041408
    %v88 = vsel %vm87, %v83, 0.0
    %v89 = vsel %vm87, %v84, 0.0
    %v90 = vadd.f32 %v88, %v89
    %v91 = vsel %vm87, %v85, 0.0
    %v92 = vadd.f32 %v90, %v91
    %v93 = vsel %vm87, %v86, 0.0
    %v94 = vadd.f32 %v92, %v93
    %95 = vadd.xlane.f32.xlu0 %v94
    %v96 = vpop.xlane.xlu0 %95
    %vm97 = vcmask 1024
    %98 = vst.msk [vmem:[%s2] sm:$0x3] %vm97, %v96
    // Predicated region
    $region18: #{tpu_custom_call.1} parent=1 // pred_check
      _
    $region19: #{tpu_custom_call.1} parent=1 // pred_check_branch
      %100 = sbr.rel (0) target = $region21
    $region20: #{tpu_custom_call.1} parent=1 // pred_region
      _
    $region21: #{tpu_custom_call.1} parent=1 // pred_fallthru
      _
    // Predicated region
    $region22: #{tpu_custom_call.1} parent=1 // pred_check
      _
    $region23: #{tpu_custom_call.1} parent=1 // pred_check_branch
      %102 = sbr.rel (0) target = $region25
    $region24: #{tpu_custom_call.1} parent=1 // pred_region
      _
    $region25: #{tpu_custom_call.1} parent=1 // pred_fallthru
      _
    %103 = vsyncpa [#allocation3], 1
    %104 = vsyncpa [#allocation5], 1

</llo_original>
